<compile_context>
chip_gen: v6e
topology: v6e:2x2x1
jax: 0.10.0
libtpu: 0.0.40
codegen_flags: <defaults>
</compile_context>

<pallas_src>
import jax
import jax.numpy as jnp
import numpy as np
from jax.experimental import pallas as pl
from jax.experimental.pallas import tpu as pltpu


def _onehot_gather_kernel(x_ref, p_ref, out_ref):
    """out2d = X @ P on the MXU.

    x_ref:   (B*D, J) VMEM tile, joints laid out lane-dense over J
    p_ref:   (J, M)   VMEM tile, one-hot selection matrix
    out_ref: (B*D, M) VMEM tile, lane-dense over M
    """
    out_ref[...] = jnp.dot(
        x_ref[...], p_ref[...], preferred_element_type=jnp.float32
    ).astype(out_ref.dtype)


def joint_mapper_forward(joints, joint_maps=None):
    """Pallas implementation of JointMapper.forward.

    joints:     (B, J, D) float array
    joint_maps: (M,) integer array or None
    returns:    (B, M, D) == index_select(joints, axis=1, joint_maps)
    """
    if joint_maps is None:
        return joints

    joint_maps = jnp.asarray(joint_maps).astype(jnp.int32)
    B, J, D = joints.shape
    # Requires a static M (true for the module: joint_maps is an __init__
    # buffer); would need a guard under shape-polymorphic tracing.
    M = int(joint_maps.shape[0])
    if M == 0:
        return joints[:, 0:0, :]

    # Clamp once in the wrapper (vectorized); keeps every VMEM access in
    # range.  Semantic difference vs torch: OOB indices are remapped, not
    # raised.
    joint_maps = jnp.clip(joint_maps, 0, J - 1)

    # Lane-dense input layout: (B, J, D) -> (B, D, J) -> (B*D, J).
    x = jnp.transpose(joints, (0, 2, 1)).reshape(B * D, J)

    # One-hot projection P (J, M): P[j, m] = 1.0 iff joint_maps[m] == j.
    p = (jnp.arange(J, dtype=jnp.int32)[:, None] == joint_maps[None, :]).astype(
        joints.dtype
    )

    out2d = pl.pallas_call(
        _onehot_gather_kernel,
        out_shape=jax.ShapeDtypeStruct((B * D, M), joints.dtype),
        grid=(1,),
        in_specs=[
            pl.BlockSpec((B * D, J), lambda i: (0, 0)),
            pl.BlockSpec((J, M), lambda i: (0, 0)),
        ],
        out_specs=pl.BlockSpec((B * D, M), lambda i: (0, 0)),
        compiler_params=pltpu.CompilerParams(
            dimension_semantics=("arbitrary",),
        ),
    )(x, p)

    # Cheap XLA relayout back to the PyTorch output shape (B, M, D).
    return out2d.reshape(B, D, M).transpose(0, 2, 1)


if __name__ == "__main__":
    key = jax.random.PRNGKey(0)
    B, J, D = 2, 8, 3
    joints = jax.random.normal(key, (B, J, D), dtype=jnp.float32)

    # Deterministic "joint_maps" buffer (module __init__ takes an index list).
    joint_maps = jnp.array([3, 1, 7, 0, 4], dtype=jnp.int32)

    out = joint_mapper_forward(joints, joint_maps)
    out = jax.block_until_ready(out)
    assert out.shape == (B, joint_maps.shape[0], D)

    # Reference: index_select along dim 1.
    ref = jnp.take(joints, joint_maps, axis=1)
    np.testing.assert_array_equal(np.asarray(out), np.asarray(ref))

    # None case: identity passthrough.
    out_id = jax.block_until_ready(joint_mapper_forward(joints, None))
    np.testing.assert_array_equal(np.asarray(out_id), np.asarray(joints))

    # Empty-map case: (B, 0, D) output.
    out_empty = jax.block_until_ready(
        joint_mapper_forward(joints, jnp.zeros((0,), dtype=jnp.int32)))
    assert out_empty.shape == (B, 0, D)

    print("KERNEL_OK")
</pallas_src>

<mosaic_0001>
module attributes {stable_mosaic.version = 11 : i64} {
  func.func @_onehot_gather_kernel(%arg0: i32, %arg1: memref<6x8xf32, #tpu.memory_space<vmem>>, %arg2: memref<8x5xf32, #tpu.memory_space<vmem>>, %arg3: memref<6x5xf32, #tpu.memory_space<vmem>>) attributes {dimension_semantics = [#tpu.dimension_semantics<arbitrary>], iteration_bounds = array<i64: 1>, scalar_prefetch = 0 : i64, scratch_operands = 0 : i64, tpu.core_type = #tpu.core_type<tc>, window_params = [{pipeline_mode = #tpu.pipeline_mode<synchronous>, transform_indices = @transform_0, window_bounds = array<i64: 6, 8>}, {pipeline_mode = #tpu.pipeline_mode<synchronous>, transform_indices = @transform_1, window_bounds = array<i64: 8, 5>}, {pipeline_mode = #tpu.pipeline_mode<synchronous>, transform_indices = @transform_2, window_bounds = array<i64: 6, 5>}]} {
    %c0 = arith.constant 0 : index
    %c0_0 = arith.constant 0 : index
    %0 = vector.load %arg1[%c0, %c0_0] : memref<6x8xf32, #tpu.memory_space<vmem>>, vector<6x8xf32>
    %c0_1 = arith.constant 0 : index
    %c0_2 = arith.constant 0 : index
    %1 = vector.load %arg2[%c0_1, %c0_2] : memref<8x5xf32, #tpu.memory_space<vmem>>, vector<8x5xf32>
    %cst = arith.constant dense<0.000000e+00> : vector<6x5xf32>
    %2 = tpu.matmul %0, %1, %cst {dimension_numbers = #tpu.dot_dimension_numbers<[1], [0], [0], [1], [0, 0, 1, 1], [], []>} : vector<6x8xf32>, vector<8x5xf32>, vector<6x5xf32> -> vector<6x5xf32>
    %c0_3 = arith.constant 0 : index
    %c0_4 = arith.constant 0 : index
    %3 = vector.load %arg3[%c0_3, %c0_4] : memref<6x5xf32, #tpu.memory_space<vmem>>, vector<6x5xf32>
    tpu.vector_store %arg3[%c0_3, %c0_4], %2 {strides = array<i32>} : memref<6x5xf32, #tpu.memory_space<vmem>>, vector<6x5xf32>,
    return
  }
  func.func @transform_0(%arg0: i32) -> (i32, i32) {
    %c0_i32 = arith.constant 0 : i32
    %c0_i32_0 = arith.constant 0 : i32
    %c0_i32_1 = arith.constant 0 : i32
    return %c0_i32, %c0_i32_0 : i32, i32
  }
  func.func @transform_1(%arg0: i32) -> (i32, i32) {
    %c0_i32 = arith.constant 0 : i32
    %c0_i32_0 = arith.constant 0 : i32
    %c0_i32_1 = arith.constant 0 : i32
    return %c0_i32, %c0_i32_0 : i32, i32
  }
  func.func @transform_2(%arg0: i32) -> (i32, i32) {
    %c0_i32 = arith.constant 0 : i32
    %c0_i32_0 = arith.constant 0 : i32
    %c0_i32_1 = arith.constant 0 : i32
    return %c0_i32, %c0_i32_0 : i32, i32
  }
}

</mosaic_0001>

<llo_original>
// kernel: tpu_custom_call.1
$region0: #{tpu_custom_call.1}
  #allocation0 [shape = 'u32[]', space=smem, size = 0x4, offset = 0x4, fixed_abs, tag = 'smem constant byte address 0x4 - core index']
  #allocation1 [shape = 'u32[144,128]{1,0:T(1,128)}', space=vmem, size = 0x12000, scoped, tag = 'internal scratch']
  %s0 = inlined_call_operand.hbm [shape: f32[6,8], index: 0, kind: input, shape index: {}]
  %s1 = inlined_call_operand.hbm [shape: f32[8,5], index: 1, kind: input, shape index: {}]
  %s2 = inlined_call_operand.hbm [shape: f32[6,5], index: 2, kind: output, shape index: {}]
  %s3 = sld [smem:[#allocation0]]
  $region26: #{tpu_custom_call.1} parent=0
    _
  %s5 = ssub.s32 1, %s3
  %s6 = scalar_select 0, %s5, %s3
  $region1: #{tpu_custom_call.1} parent=0
    #allocation2 [shape = 'u8[4096]{0}', space=vmem, size = 0x1000, scoped, tag = 'input window, operand 0, single buffered']
    #allocation3 [shape = 's32[1]{0}', space=sflag, size = 0x4, scoped, tag = 'scoped memory for tpu_custom_call.1']
    #allocation4 [shape = 's32[1]{0}', space=sflag, size = 0x4, scoped, tag = 'scoped memory for tpu_custom_call.1']
    #allocation5 [shape = 'u8[4096]{0}', space=vmem, size = 0x1000, scoped, tag = 'input window, operand 1, single buffered']
    #allocation6 [shape = 's32[1]{0}', space=sflag, size = 0x4, scoped, tag = 'scoped memory for tpu_custom_call.1']
    #allocation7 [shape = 'u8[4096]{0}', space=vmem, size = 0x1000, scoped, tag = 'output window, operand 0, single buffered']
    %7 = vsyncpa [#allocation3], 0
    %8 = vsyncpa [#allocation6], 0
    %9 = vsyncpa [#allocation4], 0
    // Predicated region
    $region2: #{tpu_custom_call.1} parent=1 // pred_check
      _
    $region3: #{tpu_custom_call.1} parent=1 // pred_check_branch
      %11 = sbr.rel (0) target = $region5
    $region4: #{tpu_custom_call.1} parent=1 // pred_region
      %s13 = ssub.s32 128, 128
      %14 = vsyncadd [#allocation3], %s13
      %s16 = sshll.u32 [#allocation2], 4
      %s17 = int_to_ptr.vmem [resolvable:$true] %s16
      %19 = dma.hbm_to_vmem [thread:$0]  %s0, 128, %s17, [#allocation3]
    $region5: #{tpu_custom_call.1} parent=1 // pred_fallthru
      _
    // Predicated region
    $region6: #{tpu_custom_call.1} parent=1 // pred_check
      _
    $region7: #{tpu_custom_call.1} parent=1 // pred_check_branch
      %21 = sbr.rel (0) target = $region9
    $region8: #{tpu_custom_call.1} parent=1 // pred_region
      %s23 = ssub.s32 128, 128
      %24 = vsyncadd [#allocation6], %s23
      %s26 = sshll.u32 [#allocation5], 4
      %s27 = int_to_ptr.vmem [resolvable:$true] %s26
      %29 = dma.hbm_to_vmem [thread:$0]  %s1, 128, %s27, [#allocation6]
    $region9: #{tpu_custom_call.1} parent=1 // pred_fallthru
      _
    // Predicated region
    $region10: #{tpu_custom_call.1} parent=1 // pred_check
      _
    $region11: #{tpu_custom_call.1} parent=1 // pred_check_branch
      %31 = sbr.rel (0) target = $region13
    $region12: #{tpu_custom_call.1} parent=1 // pred_region
      %32 = dma.done [#allocation3], 128
    $region13: #{tpu_custom_call.1} parent=1 // pred_fallthru
      _
    // Predicated region
    $region14: #{tpu_custom_call.1} parent=1 // pred_check
      _
    $region15: #{tpu_custom_call.1} parent=1 // pred_check_branch
      %34 = sbr.rel (0) target = $region17
    $region16: #{tpu_custom_call.1} parent=1 // pred_region
      %35 = dma.done [#allocation6], 128
    $region17: #{tpu_custom_call.1} parent=1 // pred_fallthru
      _
    %v36 = vld [vmem:[#allocation2] sm:$0x3f]
    %v37 = vld [vmem:[#allocation5] sm:$0xff]
    %vm38 = vcmask 64512
    %v40 = vsel %vm38, %v36, 0
    %42 = vmatprep.subr.mxu0 0.0
    %43 = vmatpush1.msra.mxu0 0.0
    %44 = vmatprep.subr.mxu0 0.0
    %45 = vmatpush1.msra.mxu0 0.0
    %46 = vmatprep.subr.mxu0 0.0
    %47 = vmatpush1.msra.mxu0 0.0
    %48 = vmatprep.subr.mxu0 0.0
    %49 = vmatpush1.msra.mxu0 0.0
    %50 = vmatprep.subr.mxu0 0.0
    %51 = vmatpush1.msra.mxu0 0.0
    %52 = vmatprep.subr.mxu0 0.0
    %53 = vmatpush1.msra.mxu0 0.0
    %54 = vmatprep.subr.mxu0 0.0
    %55 = vmatpush1.msra.mxu0 0.0
    %56 = vmatprep.subr.mxu0 0.0
    %57 = vmatpush1.msra.mxu0 0.0
    %58 = vmatprep.subr.mxu0 0.0
    %59 = vmatpush1.msra.mxu0 0.0
    %60 = vmatprep.subr.mxu0 0.0
    %61 = vmatpush1.msra.mxu0 0.0
    %62 = vmatprep.subr.mxu0 0.0
    %63 = vmatpush1.msra.mxu0 0.0
    %64 = vmatprep.subr.mxu0 0.0
    %65 = vmatpush1.msra.mxu0 0.0
    %66 = vmatprep.subr.mxu0 0.0
    %67 = vmatpush1.msra.mxu0 0.0
    %68 = vmatprep.subr.mxu0 0.0
    %69 = vmatpush1.msra.mxu0 0.0
    %70 = vmatprep.subr.mxu0 0.0
    %71 = vmatpush1.msra.mxu0 0.0
    %72 = vmatprep.subr.mxu0 0.0
    %73 = vmatpush1.msra.mxu0 %v37
    %74 = vmatprep.subr.mxu0 0.0
    %75 = vmatpush2.msra.mxu0 0.0
    %76 = vmatprep.subr.mxu0 0.0
    %77 = vmatpush2.msra.mxu0 0.0
    %78 = vmatprep.subr.mxu0 0.0
    %79 = vmatpush2.msra.mxu0 0.0
    %80 = vmatprep.subr.mxu0 0.0
    %81 = vmatpush2.msra.mxu0 0.0
    %82 = vmatprep.subr.mxu0 0.0
    %83 = vmatpush2.msra.mxu0 0.0
    %84 = vmatprep.subr.mxu0 0.0
    %85 = vmatpush2.msra.mxu0 0.0
    %86 = vmatprep.subr.mxu0 0.0
    %87 = vmatpush2.msra.mxu0 0.0
    %88 = vmatprep.subr.mxu0 0.0
    %89 = vmatpush2.msra.mxu0 0.0
    %90 = vmatprep.subr.mxu0 0.0
    %91 = vmatpush2.msra.mxu0 0.0
    %92 = vmatprep.subr.mxu0 0.0
    %93 = vmatpush2.msra.mxu0 0.0
    %94 = vmatprep.subr.mxu0 0.0
    %95 = vmatpush2.msra.mxu0 0.0
    %96 = vmatprep.subr.mxu0 0.0
    %97 = vmatpush2.msra.mxu0 0.0
    %98 = vmatprep.subr.mxu0 0.0
    %99 = vmatpush2.msra.mxu0 0.0
    %100 = vmatprep.subr.mxu0 0.0
    %101 = vmatpush2.msra.mxu0 0.0
    %102 = vmatprep.subr.mxu0 0.0
    %103 = vmatpush2.msra.mxu0 0.0
    %104 = vmatprep.subr.mxu0 0.0
    %105 = vmatpush2.msra.mxu0 0.0
    %106 = vmatprep.mubr.f32.mxu0 0.0
    %107 = vmatmul.mubr.f32.gmra.mxu0 %v40
    %v108 = vpop.f32.mrf.mxu0
    %v109 = vadd.f32 0.0, %v108
    %v110 = vpop.f32.mrf.mxu0
    %111 = vdwg.mxu0
    %vm112 = vcmask 37888
    %113 = vst.msk [vmem:[#allocation7] sm:$0x3f] %vm112, %v109
    // Predicated region
    $region18: #{tpu_custom_call.1} parent=1 // pred_check
      _
    $region19: #{tpu_custom_call.1} parent=1 // pred_check_branch
      %115 = sbr.rel (0) target = $region21
    $region20: #{tpu_custom_call.1} parent=1 // pred_region
      %s117 = ssub.s32 128, 128
      %118 = vsyncadd [#allocation4], %s117
      %s120 = sshll.u32 [#allocation7], 4
      %s121 = int_to_ptr.vmem [resolvable:$true] %s120
      %123 = dma.vmem_to_hbm [thread:$0]  %s121, 128, %s2, [#allocation4]
    $region21: #{tpu_custom_call.1} parent=1 // pred_fallthru
      _
    // Predicated region
    $region22: #{tpu_custom_call.1} parent=1 // pred_check
      _
    $region23: #{tpu_custom_call.1} parent=1 // pred_check_branch
      %125 = sbr.rel (0) target = $region25
    $region24: #{tpu_custom_call.1} parent=1 // pred_region
      %126 = dma.done [#allocation4], 128
    $region25: #{tpu_custom_call.1} parent=1 // pred_fallthru
      _
    %127 = vsyncpa [#allocation3], 1
    %128 = vsyncpa [#allocation6], 1
    %129 = vsyncpa [#allocation4], 1

</llo_original>
